<compile_context>
chip_gen: v7x
topology: tpu7x:2x2x1
jax: 0.10.0
libtpu: 0.0.40
codegen_flags: <defaults>
</compile_context>

<pallas_src>
import math

import jax
import jax.numpy as jnp
import numpy as np
from jax.experimental import pallas as pl
from jax.experimental.pallas import tpu as pltpu

EPS = 1e-4


def _stick_breaking_kernel(x_ref, w_ref, o_ref):
    # x_ref: (U, tb)   -- batch on the 128-lane axis (lane-dense)
    # w_ref: (K-1, U)  -- PyTorch Linear weight layout, resident in VMEM
    # o_ref: (K, tb)   -- transposed output tile
    x = x_ref[...]
    w = w_ref[...]
    km1 = w.shape[0]

    # eta^T = W @ x^T  -> (K-1, tb).  The only MXU matmul in the kernel.
    eta = jnp.dot(w, x, preferred_element_type=jnp.float32)

    # softplus(eta) in a numerically safe, purely elementwise form.
    sp = jnp.maximum(eta, 0.0) + jnp.log1p(jnp.exp(-jnp.abs(eta)))

    # eta_accum = softplus(eta) @ tri(K-1).T  == inclusive cumsum over the
    # class (sublane) axis.  K-1 is tiny and static, so unroll it -- no extra
    # MXU round-trips for the (7,7) / (7,8) structured matrices.
    running = sp[0:1, :]
    v_rows = [jnp.exp(eta[0:1, :] - running)]
    for i in range(1, km1):
        running = running + sp[i:i + 1, :]
        v_rows.append(jnp.exp(eta[i:i + 1, :] - running))
    v = jnp.concatenate(v_rows, axis=0)                     # (K-1, tb)

    # out = v @ smat + sb + eps  ==  [v + eps, (1 + eps) - sum(v)]
    total = jnp.sum(v, axis=0, keepdims=True)               # (1, tb)
    out = jnp.concatenate([v + EPS, (1.0 + EPS) - total], axis=0)   # (K, tb)
    o_ref[...] = out.astype(o_ref.dtype)


def stick_breaking_ordinal(x, w, *, tb=512):
    """StickBreakingOrdinal forward.

    x: (B, num_units) float32
    w: (num_classes - 1, num_units) float32  (nn.Linear weight, no bias)
    returns: (B, num_classes) float32
    """
    B, U = x.shape
    km1 = w.shape[0]
    K = km1 + 1
    assert tb % 128 == 0, "batch tile must be lane-dense (multiple of 128)"

    # Pad the batch up to a multiple of tb (padded rows are computed & dropped).
    Bp = math.ceil(B / tb) * tb
    if Bp != B:
        x = jnp.pad(x, ((0, Bp - B), (0, 0)))

    x_t = x.T  # (U, Bp): batch on the 128-lane axis

    out_t = pl.pallas_call(
        _stick_breaking_kernel,
        out_shape=jax.ShapeDtypeStruct((K, Bp), jnp.float32),
        grid_spec=pltpu.PrefetchScalarGridSpec(
            num_scalar_prefetch=0,
            grid=(Bp // tb,),
            in_specs=[
                pl.BlockSpec((U, tb), lambda i: (0, i)),    # x^T tile (lane-dense)
                pl.BlockSpec((km1, U), lambda i: (0, 0)),   # weight, resident
            ],
            out_specs=pl.BlockSpec((K, tb), lambda i: (0, i)),
        ),
        compiler_params=pltpu.CompilerParams(
            dimension_semantics=("parallel",)),
    )(x_t, w)

    return out_t.T[:B]  # single transpose back outside the kernel


def _reference(x, w):
    """Pure-JAX replica of the PyTorch module (matrix form)."""
    km1 = w.shape[0]
    k = km1 + 1
    cmat = jnp.asarray(np.tri(k - 1, k - 1).T, dtype=jnp.float32)    # (K-1, K-1)
    smat_np = np.eye(k - 1, k)
    smat_np[:, -1] -= 1
    smat = jnp.asarray(smat_np, dtype=jnp.float32)                    # (K-1, K)
    sb_np = np.zeros((1, k))
    sb_np[0, -1] = 1.0
    sb = jnp.asarray(sb_np, dtype=jnp.float32)                        # (1, K)

    hp = jax.lax.Precision.HIGHEST
    eta = jnp.dot(x, w.T, precision=hp)
    eta_accum = jnp.dot(jax.nn.softplus(eta), cmat, precision=hp)
    v = jnp.exp(eta - eta_accum)
    return jnp.dot(v, smat, precision=hp) + sb + EPS


if __name__ == "__main__":
    B, num_units, num_classes = 1024, 32, 8   # B large enough for 2 parallel tiles
    k = num_classes

    key = jax.random.PRNGKey(0)
    kx, kw = jax.random.split(key)

    # Deterministic parameter init (matches nn.Linear default uniform bound).
    bound = 1.0 / np.sqrt(num_units)
    w = jax.random.uniform(kw, (k - 1, num_units), jnp.float32, -bound, bound)
    x = jax.random.normal(kx, (B, num_units), jnp.float32)

    out = stick_breaking_ordinal(x, w, tb=512)
    out = jax.block_until_ready(out)

    ref = _reference(x, w)
    assert out.shape == (B, num_classes)
    np.testing.assert_allclose(np.asarray(out), np.asarray(ref),
                               rtol=1e-4, atol=1e-5)
    print("KERNEL_OK")
</pallas_src>

<mosaic_0001>
module attributes {stable_mosaic.version = 11 : i64} {
  func.func @_stick_breaking_kernel(%arg0: i32, %arg1: memref<32x512xf32, #tpu.memory_space<vmem>>, %arg2: memref<7x32xf32, #tpu.memory_space<vmem>>, %arg3: memref<8x512xf32, #tpu.memory_space<vmem>>) attributes {dimension_semantics = [#tpu.dimension_semantics<parallel>], iteration_bounds = array<i64: 2>, scalar_prefetch = 0 : i64, scratch_operands = 0 : i64, tpu.core_type = #tpu.core_type<tc>, window_params = [{transform_indices = @transform_0, window_bounds = array<i64: 32, 512>}, {pipeline_mode = #tpu.pipeline_mode<synchronous>, transform_indices = @transform_1, window_bounds = array<i64: 7, 32>}, {transform_indices = @transform_2, window_bounds = array<i64: 8, 512>}]} {
    %c0 = arith.constant 0 : index
    %c0_0 = arith.constant 0 : index
    %0 = vector.load %arg1[%c0, %c0_0] : memref<32x512xf32, #tpu.memory_space<vmem>>, vector<32x512xf32>
    %c0_1 = arith.constant 0 : index
    %c0_2 = arith.constant 0 : index
    %1 = vector.load %arg2[%c0_1, %c0_2] : memref<7x32xf32, #tpu.memory_space<vmem>>, vector<7x32xf32>
    %cst = arith.constant dense<0.000000e+00> : vector<7x512xf32>
    %2 = tpu.matmul %1, %0, %cst {dimension_numbers = #tpu.dot_dimension_numbers<[1], [0], [0], [1], [0, 0, 1, 1], [], []>} : vector<7x32xf32>, vector<32x512xf32>, vector<7x512xf32> -> vector<7x512xf32>
    %cst_3 = arith.constant 0.000000e+00 : f32
    %3 = vector.broadcast %cst_3 : f32 to vector<7x512xf32>
    %4 = arith.maximumf %2, %3 : vector<7x512xf32>
    %5 = math.absf %2 : vector<7x512xf32>
    %cst_4 = arith.constant 0.000000e+00 : f32
    %6 = vector.broadcast %cst_4 : f32 to vector<7x512xf32>
    %7 = arith.subf %6, %5 : vector<7x512xf32>
    %8 = math.exp %7 : vector<7x512xf32>
    %9 = math.log1p %8 : vector<7x512xf32>
    %10 = arith.addf %4, %9 : vector<7x512xf32>
    %11 = vector.extract_strided_slice %10 {offsets = [0, 0], sizes = [1, 512], strides = [1, 1]} : vector<7x512xf32> to vector<1x512xf32>
    %12 = vector.extract_strided_slice %2 {offsets = [0, 0], sizes = [1, 512], strides = [1, 1]} : vector<7x512xf32> to vector<1x512xf32>
    %13 = arith.subf %12, %11 : vector<1x512xf32>
    %14 = math.exp %13 : vector<1x512xf32>
    %15 = vector.extract_strided_slice %10 {offsets = [1, 0], sizes = [1, 512], strides = [1, 1]} : vector<7x512xf32> to vector<1x512xf32>
    %16 = arith.addf %11, %15 : vector<1x512xf32>
    %17 = vector.extract_strided_slice %2 {offsets = [1, 0], sizes = [1, 512], strides = [1, 1]} : vector<7x512xf32> to vector<1x512xf32>
    %18 = arith.subf %17, %16 : vector<1x512xf32>
    %19 = math.exp %18 : vector<1x512xf32>
    %20 = vector.extract_strided_slice %10 {offsets = [2, 0], sizes = [1, 512], strides = [1, 1]} : vector<7x512xf32> to vector<1x512xf32>
    %21 = arith.addf %16, %20 : vector<1x512xf32>
    %22 = vector.extract_strided_slice %2 {offsets = [2, 0], sizes = [1, 512], strides = [1, 1]} : vector<7x512xf32> to vector<1x512xf32>
    %23 = arith.subf %22, %21 : vector<1x512xf32>
    %24 = math.exp %23 : vector<1x512xf32>
    %25 = vector.extract_strided_slice %10 {offsets = [3, 0], sizes = [1, 512], strides = [1, 1]} : vector<7x512xf32> to vector<1x512xf32>
    %26 = arith.addf %21, %25 : vector<1x512xf32>
    %27 = vector.extract_strided_slice %2 {offsets = [3, 0], sizes = [1, 512], strides = [1, 1]} : vector<7x512xf32> to vector<1x512xf32>
    %28 = arith.subf %27, %26 : vector<1x512xf32>
    %29 = math.exp %28 : vector<1x512xf32>
    %30 = vector.extract_strided_slice %10 {offsets = [4, 0], sizes = [1, 512], strides = [1, 1]} : vector<7x512xf32> to vector<1x512xf32>
    %31 = arith.addf %26, %30 : vector<1x512xf32>
    %32 = vector.extract_strided_slice %2 {offsets = [4, 0], sizes = [1, 512], strides = [1, 1]} : vector<7x512xf32> to vector<1x512xf32>
    %33 = arith.subf %32, %31 : vector<1x512xf32>
    %34 = math.exp %33 : vector<1x512xf32>
    %35 = vector.extract_strided_slice %10 {offsets = [5, 0], sizes = [1, 512], strides = [1, 1]} : vector<7x512xf32> to vector<1x512xf32>
    %36 = arith.addf %31, %35 : vector<1x512xf32>
    %37 = vector.extract_strided_slice %2 {offsets = [5, 0], sizes = [1, 512], strides = [1, 1]} : vector<7x512xf32> to vector<1x512xf32>
    %38 = arith.subf %37, %36 : vector<1x512xf32>
    %39 = math.exp %38 : vector<1x512xf32>
    %40 = vector.extract_strided_slice %10 {offsets = [6, 0], sizes = [1, 512], strides = [1, 1]} : vector<7x512xf32> to vector<1x512xf32>
    %41 = arith.addf %36, %40 : vector<1x512xf32>
    %42 = vector.extract_strided_slice %2 {offsets = [6, 0], sizes = [1, 512], strides = [1, 1]} : vector<7x512xf32> to vector<1x512xf32>
    %43 = arith.subf %42, %41 : vector<1x512xf32>
    %44 = math.exp %43 : vector<1x512xf32>
    %45 = tpu.concatenate %14, %19, %24, %29, %34, %39, %44 in 0 : vector<1x512xf32>, vector<1x512xf32>, vector<1x512xf32>, vector<1x512xf32>, vector<1x512xf32>, vector<1x512xf32>, vector<1x512xf32> -> vector<7x512xf32>
    %cst_5 = arith.constant dense<0.000000e+00> : vector<512xf32>
    %46 = vector.multi_reduction <add>, %45, %cst_5 [0] : vector<7x512xf32> to vector<512xf32>
    %47 = vector.shape_cast %46 : vector<512xf32> to vector<1x512xf32>
    %cst_6 = arith.constant 9.99999974E-5 : f32
    %48 = vector.broadcast %cst_6 : f32 to vector<7x512xf32>
    %49 = arith.addf %45, %48 : vector<7x512xf32>
    %cst_7 = arith.constant 1.000100e+00 : f32
    %50 = vector.broadcast %cst_7 : f32 to vector<1x512xf32>
    %51 = arith.subf %50, %47 : vector<1x512xf32>
    %52 = tpu.concatenate %49, %51 in 0 : vector<7x512xf32>, vector<1x512xf32> -> vector<8x512xf32>
    %c0_8 = arith.constant 0 : index
    %c0_9 = arith.constant 0 : index
    %53 = vector.load %arg3[%c0_8, %c0_9] : memref<8x512xf32, #tpu.memory_space<vmem>>, vector<8x512xf32>
    tpu.vector_store %arg3[%c0_8, %c0_9], %52 {strides = array<i32>} : memref<8x512xf32, #tpu.memory_space<vmem>>, vector<8x512xf32>,
    return
  }
  func.func @transform_0(%arg0: i32) -> (i32, i32) {
    %c0_i32 = arith.constant 0 : i32
    %c0_i32_0 = arith.constant 0 : i32
    return %c0_i32, %arg0 : i32, i32
  }
  func.func @transform_1(%arg0: i32) -> (i32, i32) {
    %c0_i32 = arith.constant 0 : i32
    %c0_i32_0 = arith.constant 0 : i32
    %c0_i32_1 = arith.constant 0 : i32
    return %c0_i32, %c0_i32_0 : i32, i32
  }
  func.func @transform_2(%arg0: i32) -> (i32, i32) {
    %c0_i32 = arith.constant 0 : i32
    %c0_i32_0 = arith.constant 0 : i32
    return %c0_i32, %arg0 : i32, i32
  }
}

</mosaic_0001>

<llo_original>
// kernel: tpu_custom_call.1
$region0: #{tpu_custom_call.1}
  #allocation0 [shape = 'u32[]', space=smem, size = 0x4, offset = 0x4, fixed_abs, tag = 'smem constant byte address 0x4 - core index']
  #allocation1 [shape = 'u32[144,128]{1,0:T(1,128)}', space=vmem, size = 0x12000, scoped, tag = 'internal scratch']
  %s0 = inlined_call_operand.hbm [shape: f32[32,1024], index: 0, kind: input, shape index: {}]
  %s1 = inlined_call_operand.hbm [shape: f32[7,32], index: 1, kind: input, shape index: {}]
  %s2 = inlined_call_operand.hbm [shape: f32[8,1024], index: 2, kind: output, shape index: {}]
  %s3 = sld [smem:[#allocation0]]
  $region49: #{tpu_custom_call.1} parent=0
    _
  %s5 = ssub.s32 1, %s3
  %s6 = scalar_select 0, %s5, %s3
  $region1: #{tpu_custom_call.1} parent=0
    #allocation2 [shape = 'u8[131072]{0}', space=vmem, size = 0x20000, scoped, tag = 'input window, operand 0']
    #allocation3 [shape = 's32[2]{0}', space=sflag, size = 0x8, scoped, tag = 'scoped memory for tpu_custom_call.1']
    #allocation4 [shape = 's32[2]{0}', space=sflag, size = 0x8, scoped, tag = 'scoped memory for tpu_custom_call.1']
    #allocation5 [shape = 'u8[4096]{0}', space=vmem, size = 0x1000, scoped, tag = 'input window, operand 1, single buffered']
    #allocation6 [shape = 's32[1]{0}', space=sflag, size = 0x4, scoped, tag = 'scoped memory for tpu_custom_call.1']
    #allocation7 [shape = 'u8[32768]{0}', space=vmem, size = 0x8000, scoped, tag = 'output window, operand 0']
    %7 = vsyncpa [#allocation3], 0
    %s8 = scalar_lea.sflag [#allocation3], 1
    %9 = vsyncpa %s8, 0
    %10 = vsyncpa [#allocation6], 0
    %11 = vsyncpa [#allocation4], 0
    %s12 = scalar_lea.sflag [#allocation4], 1
    %13 = vsyncpa %s12, 0
    loop: start=0, step=1, limit=4
    $region2: #{tpu_custom_call.1} parent=1 // loop_pre_header
      _
    $region3: #{tpu_custom_call.1} parent=1 // loop_header
      %s15 = sphi 0, %s19
      %p16 = scmp.ge.s32.totalorder %s15, 4
      %s25 = sphi 0, %s27
      %s28 = sphi 0, %s25
      %s29 = sphi 0, %s28
      %s45 = sphi 0, %s29
      %s49 = sphi 0, %s49
      %s51 = sphi 0, %s49
      %s52 = sphi 0, %s51
      %s66 = sphi 0, %s52
      %s72 = sphi 0, %s74
      %s75 = sphi 0, %s72
      %s76 = sphi 0, %s75
      %s92 = sphi 0, %s76
    $region4: #{tpu_custom_call.1} parent=1 // loop_header_branch
      %18 = sbr.rel (%p16) target = $region8
    $region5: #{tpu_custom_call.1} parent=1 // loop_body
      %s20 = ssub.s32 %s15, 1
      %s21 = ssub.s32 %s15, 2
      %s22 = sadd.s32 %s15, 1
      %s23 = ssub.s32 %s15, %s22
      %p24 = scmp.eq.s32.totalorder %s23, 0
      %s26 = sadd.s32 %s25, 1
      %s27 = scalar_select %p24, %s25, %s26
      %p30 = pneg %p24
      %p31 = scmp.eq.s32.totalorder %s15, 1
      %p32 = por %p30, %p31
      %p33 = scmp.ne.s32.totalorder %s25, %s28
      %p34 = scmp.eq.s32.totalorder %s15, 0
      %p35 = por %p33, %p34
      %p36 = scmp.ne.s32.totalorder %s25, %s28
      %p37 = scmp.eq.s32.totalorder %s20, 1
      %p38 = por %p36, %p37
      %p39 = scmp.ne.s32.totalorder %s28, %s29
      %p40 = scmp.eq.s32.totalorder %s20, 0
      %p41 = por %p39, %p40
      %p42 = scmp.ne.s32.totalorder %s28, %s29
      %p43 = scmp.eq.s32.totalorder %s21, 1
      %p44 = por %p42, %p43
      %p46 = scmp.ne.s32.totalorder %s29, %s45
      %p47 = scmp.eq.s32.totalorder %s21, 0
      %p48 = por %p46, %p47
      %s50 = sadd.s32 %s49, 1
      %p53 = scmp.eq.s32.totalorder %s15, 1
      %p54 = scmp.ne.s32.totalorder %s49, %s51
      %p55 = scmp.eq.s32.totalorder %s15, 0
      %p56 = por %p54, %p55
      %p57 = scmp.ne.s32.totalorder %s49, %s51
      %p58 = scmp.eq.s32.totalorder %s20, 1
      %p59 = por %p57, %p58
      %p60 = scmp.ne.s32.totalorder %s51, %s52
      %p61 = scmp.eq.s32.totalorder %s20, 0
      %p62 = por %p60, %p61
      %p63 = scmp.ne.s32.totalorder %s51, %s52
      %p64 = scmp.eq.s32.totalorder %s21, 1
      %p65 = por %p63, %p64
      %p67 = scmp.ne.s32.totalorder %s52, %s66
      %p68 = scmp.eq.s32.totalorder %s21, 0
      %p69 = por %p67, %p68
      %s70 = ssub.s32 %s15, %s22
      %p71 = scmp.eq.s32.totalorder %s70, 0
      %s73 = sadd.s32 %s72, 1
      %s74 = scalar_select %p71, %s72, %s73
      %p77 = pneg %p71
      %p78 = scmp.eq.s32.totalorder %s15, 1
      %p79 = por %p77, %p78
      %p80 = scmp.ne.s32.totalorder %s72, %s75
      %p81 = scmp.eq.s32.totalorder %s15, 0
      %p82 = por %p80, %p81
      %p83 = scmp.ne.s32.totalorder %s72, %s75
      %p84 = scmp.eq.s32.totalorder %s20, 1
      %p85 = por %p83, %p84
      %p86 = scmp.ne.s32.totalorder %s75, %s76
      %p87 = scmp.eq.s32.totalorder %s20, 0
      %p88 = por %p86, %p87
      %p89 = scmp.ne.s32.totalorder %s75, %s76
      %p90 = scmp.eq.s32.totalorder %s21, 1
      %p91 = por %p89, %p90
      %p93 = scmp.ne.s32.totalorder %s76, %s92
      %p94 = scmp.eq.s32.totalorder %s21, 0
      %p95 = por %p93, %p94
      %p96 = scmp.le.s32.totalorder 1, %s15
      %p97 = scmp.lt.s32.totalorder %s15, 3
      %p98 = pnand %p96, %p97
      %p99 = pneg %p98
      // Predicated region
      $region9: #{tpu_custom_call.1} parent=5 // pred_check
        _
      $region10: #{tpu_custom_call.1} parent=5 // pred_check_branch
        %101 = sbr.rel (%p98) target = $region12
      $region11: #{tpu_custom_call.1} parent=5 // pred_region
        %s102 = ssub.s32 %s15, 1
        // Predicated region
        $region13: #{tpu_custom_call.1} parent=11 // pred_check
          %p103 = pneg %p62
        $region14: #{tpu_custom_call.1} parent=11 // pred_check_branch
          %105 = sbr.rel (%p103) target = $region16
        $region15: #{tpu_custom_call.1} parent=11 // pred_region
          %s107 = ssub.s32 128, 128
          %108 = vsyncadd [#allocation6], %s107
          %s110 = sshll.u32 [#allocation5], 4
          %s111 = int_to_ptr.vmem [resolvable:$true] %s110
          %113 = dma.hbm_to_vmem [thread:$0]  %s1, 128, %s111, [#allocation6]
        $region16: #{tpu_custom_call.1} parent=11 // pred_fallthru
          _
      $region12: #{tpu_custom_call.1} parent=5 // pred_fallthru
        _
      %p114 = scmp.lt.s32.totalorder %s15, 2
      // Predicated region
      $region17: #{tpu_custom_call.1} parent=5 // pred_check
        %p115 = pneg %p114
      $region18: #{tpu_custom_call.1} parent=5 // pred_check_branch
        %117 = sbr.rel (%p115) target = $region20
      $region19: #{tpu_custom_call.1} parent=5 // pred_region
        // Predicated region
        $region21: #{tpu_custom_call.1} parent=19 // pred_check
          %p118 = pneg %p35
        $region22: #{tpu_custom_call.1} parent=19 // pred_check_branch
          %120 = sbr.rel (%p118) target = $region24
        $region23: #{tpu_custom_call.1} parent=19 // pred_region
          %s121 = sand.u32 %s25, 1
          %s122 = scalar_lea.sflag [#allocation3], %s121
          %s123 = sand.u32 %s25, 1
          %s124 = smul.addr %s123, 128
          %s125 = scalar_lea.vmem [#allocation2], %s124
          %s126 = smul.u32 4, %s15
          %s128 = ssub.s32 2048, 2048
          %129 = vsyncadd %s122, %s128
          %s130 = smul.addr %s126, 128
          %s131 = scalar_lea.hbm %s0, %s130
          %s132 = sshll.u32 %s125, 4
          %s133 = int_to_ptr.vmem [resolvable:$true] %s132
          %138 = dma.hbm_to_vmem [thread:$0]  %s131, 2048, %s133, %s122, 1024, 512, 32
        $region24: #{tpu_custom_call.1} parent=19 // pred_fallthru
          _
      $region20: #{tpu_custom_call.1} parent=5 // pred_fallthru
        _
      %p139 = scmp.le.s32.totalorder 1, %s15
      %p140 = scmp.lt.s32.totalorder %s15, 3
      %p141 = pnand %p139, %p140
      %p142 = pneg %p141
      // Predicated region
      $region25: #{tpu_custom_call.1} parent=5 // pred_check
        _
      $region26: #{tpu_custom_call.1} parent=5 // pred_check_branch
        %144 = sbr.rel (%p141) target = $region28
      $region27: #{tpu_custom_call.1} parent=5 // pred_region
        %s145 = ssub.s32 %s15, 1
        %s146 = sand.u32 %s28, 1
        %s147 = scalar_lea.sflag [#allocation3], %s146
        %s148 = sand.u32 %s28, 1
        %s149 = smul.addr %s148, 128
        %s150 = scalar_lea.vmem [#allocation2], %s149
        // Predicated region
        $region29: #{tpu_custom_call.1} parent=27 // pred_check
          %p151 = pneg %p41
        $region30: #{tpu_custom_call.1} parent=27 // pred_check_branch
          %153 = sbr.rel (%p151) target = $region32
        $region31: #{tpu_custom_call.1} parent=27 // pred_region
          %154 = dma.done %s147, 2048
        $region32: #{tpu_custom_call.1} parent=27 // pred_fallthru
          _
        // Predicated region
        $region33: #{tpu_custom_call.1} parent=27 // pred_check
          %p155 = pneg %p62
        $region34: #{tpu_custom_call.1} parent=27 // pred_check_branch
          %157 = sbr.rel (%p155) target = $region36
        $region35: #{tpu_custom_call.1} parent=27 // pred_region
          %158 = dma.done [#allocation6], 128
        $region36: #{tpu_custom_call.1} parent=27 // pred_fallthru
          _
        %s159 = sand.u32 %s28, 1
        %s160 = scalar_lea.sflag [#allocation3], %s159
        %s161 = sand.u32 %s28, 1
        %s162 = smul.addr %s161, 128
        %s163 = scalar_lea.vmem [#allocation2], %s162
        %p164 = pneg %p41
        %p165 = pneg %p38
        %p166 = pneg %p62
        %p167 = pneg %p59
        %p168 = pneg %p88
        %p169 = pneg %p85
        %s170 = sand.u32 %s75, 1
        %s171 = scalar_lea.sflag [#allocation4], %s170
        %s172 = sand.u32 %s75, 1
        %s173 = smul.addr %s172, 32
        %s174 = scalar_lea.vmem [#allocation7], %s173
        %s175 = smul.u32 4, %s20
        %s176 = smul.u32 4, %s20
        %v177 = vld [vmem:[%s150] sm:$0xff]
        %v178 = vld [vmem:[%s150 + $0x8] sm:$0xff]
        %v179 = vld [vmem:[%s150 + $0x10] sm:$0xff]
        %v180 = vld [vmem:[%s150 + $0x18] sm:$0xff]
        %v181 = vld [vmem:[%s150 + $0x20] sm:$0xff]
        %v182 = vld [vmem:[%s150 + $0x28] sm:$0xff]
        %v183 = vld [vmem:[%s150 + $0x30] sm:$0xff]
        %v184 = vld [vmem:[%s150 + $0x38] sm:$0xff]
        %v185 = vld [vmem:[%s150 + $0x40] sm:$0xff]
        %v186 = vld [vmem:[%s150 + $0x48] sm:$0xff]
        %v187 = vld [vmem:[%s150 + $0x50] sm:$0xff]
        %v188 = vld [vmem:[%s150 + $0x58] sm:$0xff]
        %v189 = vld [vmem:[%s150 + $0x60] sm:$0xff]
        %v190 = vld [vmem:[%s150 + $0x68] sm:$0xff]
        %v191 = vld [vmem:[%s150 + $0x70] sm:$0xff]
        %v192 = vld [vmem:[%s150 + $0x78] sm:$0xff]
        %v193 = vld [vmem:[#allocation5] sm:$0x7f]
        %vm194 = vcmask 261120
        %v196 = vsel %vm194, %v193, 0
        %198 = vmatprep.subr.mxu0 %v178
        %199 = vmatpush1.msra.mxu0 %v177
        %200 = vmatprep.subr.mxu0 %v182
        %201 = vmatpush1.msra.mxu0 %v181
        %202 = vmatprep.subr.mxu0 %v186
        %203 = vmatpush1.msra.mxu0 %v185
        %204 = vmatprep.subr.mxu0 %v190
        %205 = vmatpush1.msra.mxu0 %v189
        %206 = vmatprep.subr.mxu0 0.0
        %207 = vmatpush1.msra.mxu0 0.0
        %208 = vmatprep.subr.mxu0 0.0
        %209 = vmatpush1.msra.mxu0 0.0
        %210 = vmatprep.subr.mxu0 0.0
        %211 = vmatpush1.msra.mxu0 0.0
        %212 = vmatprep.subr.mxu0 0.0
        %213 = vmatpush1.msra.mxu0 0.0
        %214 = vmatprep.subr.mxu0 0.0
        %215 = vmatpush1.msra.mxu0 0.0
        %216 = vmatprep.subr.mxu0 0.0
        %217 = vmatpush1.msra.mxu0 0.0
        %218 = vmatprep.subr.mxu0 0.0
        %219 = vmatpush1.msra.mxu0 0.0
        %220 = vmatprep.subr.mxu0 0.0
        %221 = vmatpush1.msra.mxu0 0.0
        %222 = vmatprep.subr.mxu0 0.0
        %223 = vmatpush1.msra.mxu0 0.0
        %224 = vmatprep.subr.mxu0 0.0
        %225 = vmatpush1.msra.mxu0 0.0
        %226 = vmatprep.subr.mxu0 0.0
        %227 = vmatpush1.msra.mxu0 0.0
        %228 = vmatprep.subr.mxu0 0.0
        %229 = vmatpush1.msra.mxu0 0.0
        %230 = vmatprep.subr.mxu0 0.0
        %231 = vmatpush1.msra.mxu0 0.0
        %232 = vmatprep.subr.mxu0 0.0
        %233 = vmatpush1.msra.mxu0 0.0
        %234 = vmatprep.subr.mxu0 0.0
        %235 = vmatpush1.msra.mxu0 0.0
        %236 = vmatprep.subr.mxu0 0.0
        %237 = vmatpush1.msra.mxu0 0.0
        %238 = vmatprep.subr.mxu0 0.0
        %239 = vmatpush1.msra.mxu0 0.0
        %240 = vmatprep.subr.mxu0 0.0
        %241 = vmatpush1.msra.mxu0 0.0
        %242 = vmatprep.subr.mxu0 0.0
        %243 = vmatpush1.msra.mxu0 0.0
        %244 = vmatprep.subr.mxu0 0.0
        %245 = vmatpush1.msra.mxu0 0.0
        %246 = vmatprep.subr.mxu0 0.0
        %247 = vmatpush1.msra.mxu0 0.0
        %248 = vmatprep.subr.mxu0 0.0
        %249 = vmatpush1.msra.mxu0 0.0
        %250 = vmatprep.subr.mxu0 0.0
        %251 = vmatpush1.msra.mxu0 0.0
        %252 = vmatprep.subr.mxu0 0.0
        %253 = vmatpush1.msra.mxu0 0.0
        %254 = vmatprep.subr.mxu0 0.0
        %255 = vmatpush1.msra.mxu0 0.0
        %256 = vmatprep.subr.mxu0 0.0
        %257 = vmatpush1.msra.mxu0 0.0
        %258 = vmatprep.subr.mxu0 0.0
        %259 = vmatpush1.msra.mxu0 0.0
        %260 = vmatprep.subr.mxu0 0.0
        %261 = vmatpush1.msra.mxu0 0.0
        %262 = vmatprep.mubr.f32.mxu0 0.0
        %263 = vmatmul.mubr.f32.gmra.mrb[0].mxu0 %v196
        %v264 = vpop.f32.mrb[0].mxu0
        %v265 = vadd.f32 0.0, %v264
        %v266 = vpop.f32.mrb[0].mxu0
        %v267 = vadd.f32 0.0, %v266
        %268 = vdwg.mxu0
        %269 = vmatprep.subr.mxu0 %v180
        %270 = vmatpush1.msra.mxu0 %v179
        %271 = vmatprep.subr.mxu0 %v184
        %272 = vmatpush1.msra.mxu0 %v183
        %273 = vmatprep.subr.mxu0 %v188
        %274 = vmatpush1.msra.mxu0 %v187
        %275 = vmatprep.subr.mxu0 %v192
        %276 = vmatpush1.msra.mxu0 %v191
        %277 = vmatprep.subr.mxu0 0.0
        %278 = vmatpush1.msra.mxu0 0.0
        %279 = vmatprep.subr.mxu0 0.0
        %280 = vmatpush1.msra.mxu0 0.0
        %281 = vmatprep.subr.mxu0 0.0
        %282 = vmatpush1.msra.mxu0 0.0
        %283 = vmatprep.subr.mxu0 0.0
        %284 = vmatpush1.msra.mxu0 0.0
        %285 = vmatprep.subr.mxu0 0.0
        %286 = vmatpush1.msra.mxu0 0.0
        %287 = vmatprep.subr.mxu0 0.0
        %288 = vmatpush1.msra.mxu0 0.0
        %289 = vmatprep.subr.mxu0 0.0
        %290 = vmatpush1.msra.mxu0 0.0
        %291 = vmatprep.subr.mxu0 0.0
        %292 = vmatpush1.msra.mxu0 0.0
        %293 = vmatprep.subr.mxu0 0.0
        %294 = vmatpush1.msra.mxu0 0.0
        %295 = vmatprep.subr.mxu0 0.0
        %296 = vmatpush1.msra.mxu0 0.0
        %297 = vmatprep.subr.mxu0 0.0
        %298 = vmatpush1.msra.mxu0 0.0
        %299 = vmatprep.subr.mxu0 0.0
        %300 = vmatpush1.msra.mxu0 0.0
        %301 = vmatprep.subr.mxu0 0.0
        %302 = vmatpush1.msra.mxu0 0.0
        %303 = vmatprep.subr.mxu0 0.0
        %304 = vmatpush1.msra.mxu0 0.0
        %305 = vmatprep.subr.mxu0 0.0
        %306 = vmatpush1.msra.mxu0 0.0
        %307 = vmatprep.subr.mxu0 0.0
        %308 = vmatpush1.msra.mxu0 0.0
        %309 = vmatprep.subr.mxu0 0.0
        %310 = vmatpush1.msra.mxu0 0.0
        %311 = vmatprep.subr.mxu0 0.0
        %312 = vmatpush1.msra.mxu0 0.0
        %313 = vmatprep.subr.mxu0 0.0
        %314 = vmatpush1.msra.mxu0 0.0
        %315 = vmatprep.subr.mxu0 0.0
        %316 = vmatpush1.msra.mxu0 0.0
        %317 = vmatprep.subr.mxu0 0.0
        %318 = vmatpush1.msra.mxu0 0.0
        %319 = vmatprep.subr.mxu0 0.0
        %320 = vmatpush1.msra.mxu0 0.0
        %321 = vmatprep.subr.mxu0 0.0
        %322 = vmatpush1.msra.mxu0 0.0
        %323 = vmatprep.subr.mxu0 0.0
        %324 = vmatpush1.msra.mxu0 0.0
        %325 = vmatprep.subr.mxu0 0.0
        %326 = vmatpush1.msra.mxu0 0.0
        %327 = vmatprep.subr.mxu0 0.0
        %328 = vmatpush1.msra.mxu0 0.0
        %329 = vmatprep.subr.mxu0 0.0
        %330 = vmatpush1.msra.mxu0 0.0
        %331 = vmatprep.subr.mxu0 0.0
        %332 = vmatpush1.msra.mxu0 0.0
        %333 = vmatprep.mubr.f32.mxu0 0.0
        %334 = vmatmul.mubr.f32.gmra.mrb[0].mxu0 %v196
        %v335 = vpop.f32.mrb[0].mxu0
        %v336 = vadd.f32 0.0, %v335
        %v337 = vpop.f32.mrb[0].mxu0
        %v338 = vadd.f32 0.0, %v337
        %339 = vdwg.mxu0
        %v340 = vmax.f32 %v265, 0.0
        %v341 = vmax.f32 %v267, 0.0
        %v342 = vmax.f32 %v336, 0.0
        %v343 = vmax.f32 %v338, 0.0
        %v344 = vand.u32 2147483647, %v265
        %v345 = vand.u32 2147483647, %v267
        %v346 = vand.u32 2147483647, %v336
        %v347 = vand.u32 2147483647, %v338
        %v348 = vsub.f32 0.0, %v344
        %v349 = vsub.f32 0.0, %v345
        %v350 = vsub.f32 0.0, %v346
        %v351 = vsub.f32 0.0, %v347
        %v352 = vmul.f32 %v348, 1.442695
        %v353 = vpow.pop %v352
        %v354 = vmul.f32 %v349, 1.442695
        %v355 = vpow.pop %v354
        %v356 = vmul.f32 %v350, 1.442695
        %v357 = vpow.pop %v356
        %v358 = vmul.f32 %v351, 1.442695
        %v359 = vpow.pop %v358
        %v360 = vadd.f32 %v353, 1.0
        %v361 = vlog2.pop %v360
        %v362 = vmul.f32 %v361, 0.6931472
        %v363 = vmul.f32 -0.5, %v353
        %v364 = vadd.f32 %v363, 1.0
        %v365 = vmul.f32 %v364, %v353
        %v366 = vand.u32 2147483647, %v353
        %vm367 = vcmp.lt.f32.partialorder %v366, 0.0004427343
        %v368 = vsel %vm367, %v365, %v362
        %v369 = vadd.f32 %v355, 1.0
        %v370 = vlog2.pop %v369
        %v371 = vmul.f32 %v370, 0.6931472
        %v372 = vmul.f32 -0.5, %v355
        %v373 = vadd.f32 %v372, 1.0
        %v374 = vmul.f32 %v373, %v355
        %v375 = vand.u32 2147483647, %v355
        %vm376 = vcmp.lt.f32.partialorder %v375, 0.0004427343
        %v377 = vsel %vm376, %v374, %v371
        %v378 = vadd.f32 %v357, 1.0
        %v379 = vlog2.pop %v378
        %v380 = vmul.f32 %v379, 0.6931472
        %v381 = vmul.f32 -0.5, %v357
        %v382 = vadd.f32 %v381, 1.0
        %v383 = vmul.f32 %v382, %v357
        %v384 = vand.u32 2147483647, %v357
        %vm385 = vcmp.lt.f32.partialorder %v384, 0.0004427343
        %v386 = vsel %vm385, %v383, %v380
        %v387 = vadd.f32 %v359, 1.0
        %v388 = vlog2.pop %v387
        %v389 = vmul.f32 %v388, 0.6931472
        %v390 = vmul.f32 -0.5, %v359
        %v391 = vadd.f32 %v390, 1.0
        %v392 = vmul.f32 %v391, %v359
        %v393 = vand.u32 2147483647, %v359
        %vm394 = vcmp.lt.f32.partialorder %v393, 0.0004427343
        %v395 = vsel %vm394, %v392, %v389
        %v396 = vadd.f32 %v340, %v368
        %v397 = vadd.f32 %v341, %v377
        %v398 = vadd.f32 %v342, %v386
        %v399 = vadd.f32 %v343, %v395
        %v400 = vsub.f32 %v265, %v396
        %v401 = vsub.f32 %v267, %v397
        %v402 = vsub.f32 %v336, %v398
        %v403 = vsub.f32 %v338, %v399
        %v404 = vmul.f32 %v400, 1.442695
        %v405 = vpow.pop %v404
        %v406 = vmul.f32 %v401, 1.442695
        %v407 = vpow.pop %v406
        %v408 = vmul.f32 %v402, 1.442695
        %v409 = vpow.pop %v408
        %v410 = vmul.f32 %v403, 1.442695
        %v411 = vpow.pop %v410
        %v416 = vrot.slane %v396, 1
        %v417 = vrot.slane %v397, 1
        %v418 = vrot.slane %v398, 1
        %v419 = vrot.slane %v399, 1
        %v424 = vadd.f32 %v396, %v416
        %v425 = vadd.f32 %v397, %v417
        %v426 = vadd.f32 %v398, %v418
        %v427 = vadd.f32 %v399, %v419
        %v432 = vrot.slane %v424, 7
        %v433 = vrot.slane %v425, 7
        %v434 = vrot.slane %v426, 7
        %v435 = vrot.slane %v427, 7
        %v440 = vsub.f32 %v265, %v432
        %v441 = vsub.f32 %v267, %v433
        %v442 = vsub.f32 %v336, %v434
        %v443 = vsub.f32 %v338, %v435
        %v444 = vmul.f32 %v440, 1.442695
        %v445 = vpow.pop %v444
        %v446 = vmul.f32 %v441, 1.442695
        %v447 = vpow.pop %v446
        %v448 = vmul.f32 %v442, 1.442695
        %v449 = vpow.pop %v448
        %v450 = vmul.f32 %v443, 1.442695
        %v451 = vpow.pop %v450
        %v452 = vrot.slane %v396, 2
        %v453 = vrot.slane %v397, 2
        %v454 = vrot.slane %v398, 2
        %v455 = vrot.slane %v399, 2
        %v460 = vadd.f32 %v424, %v452
        %v461 = vadd.f32 %v425, %v453
        %v462 = vadd.f32 %v426, %v454
        %v463 = vadd.f32 %v427, %v455
        %v468 = vrot.slane %v460, 6
        %v469 = vrot.slane %v461, 6
        %v470 = vrot.slane %v462, 6
        %v471 = vrot.slane %v463, 6
        %v476 = vsub.f32 %v265, %v468
        %v477 = vsub.f32 %v267, %v469
        %v478 = vsub.f32 %v336, %v470
        %v479 = vsub.f32 %v338, %v471
        %v480 = vmul.f32 %v476, 1.442695
        %v481 = vpow.pop %v480
        %v482 = vmul.f32 %v477, 1.442695
        %v483 = vpow.pop %v482
        %v484 = vmul.f32 %v478, 1.442695
        %v485 = vpow.pop %v484
        %v486 = vmul.f32 %v479, 1.442695
        %v487 = vpow.pop %v486
        %v488 = vrot.slane %v396, 3
        %v489 = vrot.slane %v397, 3
        %v490 = vrot.slane %v398, 3
        %v491 = vrot.slane %v399, 3
        %v496 = vadd.f32 %v460, %v488
        %v497 = vadd.f32 %v461, %v489
        %v498 = vadd.f32 %v462, %v490
        %v499 = vadd.f32 %v463, %v491
        %v504 = vrot.slane %v496, 5
        %v505 = vrot.slane %v497, 5
        %v506 = vrot.slane %v498, 5
        %v507 = vrot.slane %v499, 5
        %v512 = vsub.f32 %v265, %v504
        %v513 = vsub.f32 %v267, %v505
        %v514 = vsub.f32 %v336, %v506
        %v515 = vsub.f32 %v338, %v507
        %v516 = vmul.f32 %v512, 1.442695
        %v517 = vpow.pop %v516
        %v518 = vmul.f32 %v513, 1.442695
        %v519 = vpow.pop %v518
        %v520 = vmul.f32 %v514, 1.442695
        %v521 = vpow.pop %v520
        %v522 = vmul.f32 %v515, 1.442695
        %v523 = vpow.pop %v522
        %v524 = vrot.slane %v396, 4
        %v525 = vrot.slane %v397, 4
        %v526 = vrot.slane %v398, 4
        %v527 = vrot.slane %v399, 4
        %v532 = vadd.f32 %v496, %v524
        %v533 = vadd.f32 %v497, %v525
        %v534 = vadd.f32 %v498, %v526
        %v535 = vadd.f32 %v499, %v527
        %v540 = vrot.slane %v532, 4
        %v541 = vrot.slane %v533, 4
        %v542 = vrot.slane %v534, 4
        %v543 = vrot.slane %v535, 4
        %v548 = vsub.f32 %v265, %v540
        %v549 = vsub.f32 %v267, %v541
        %v550 = vsub.f32 %v336, %v542
        %v551 = vsub.f32 %v338, %v543
        %v552 = vmul.f32 %v548, 1.442695
        %v553 = vpow.pop %v552
        %v554 = vmul.f32 %v549, 1.442695
        %v555 = vpow.pop %v554
        %v556 = vmul.f32 %v550, 1.442695
        %v557 = vpow.pop %v556
        %v558 = vmul.f32 %v551, 1.442695
        %v559 = vpow.pop %v558
        %v560 = vrot.slane %v396, 5
        %v561 = vrot.slane %v397, 5
        %v562 = vrot.slane %v398, 5
        %v563 = vrot.slane %v399, 5
        %v568 = vadd.f32 %v532, %v560
        %v569 = vadd.f32 %v533, %v561
        %v570 = vadd.f32 %v534, %v562
        %v571 = vadd.f32 %v535, %v563
        %v576 = vrot.slane %v568, 3
        %v577 = vrot.slane %v569, 3
        %v578 = vrot.slane %v570, 3
        %v579 = vrot.slane %v571, 3
        %v584 = vsub.f32 %v265, %v576
        %v585 = vsub.f32 %v267, %v577
        %v586 = vsub.f32 %v336, %v578
        %v587 = vsub.f32 %v338, %v579
        %v588 = vmul.f32 %v584, 1.442695
        %v589 = vpow.pop %v588
        %v590 = vmul.f32 %v585, 1.442695
        %v591 = vpow.pop %v590
        %v592 = vmul.f32 %v586, 1.442695
        %v593 = vpow.pop %v592
        %v594 = vmul.f32 %v587, 1.442695
        %v595 = vpow.pop %v594
        %v596 = vrot.slane %v396, 6
        %v597 = vrot.slane %v397, 6
        %v598 = vrot.slane %v398, 6
        %v599 = vrot.slane %v399, 6
        %v604 = vadd.f32 %v568, %v596
        %v605 = vadd.f32 %v569, %v597
        %v606 = vadd.f32 %v570, %v598
        %v607 = vadd.f32 %v571, %v599
        %v612 = vrot.slane %v604, 2
        %v613 = vrot.slane %v605, 2
        %v614 = vrot.slane %v606, 2
        %v615 = vrot.slane %v607, 2
        %v620 = vsub.f32 %v265, %v612
        %v621 = vsub.f32 %v267, %v613
        %v622 = vsub.f32 %v336, %v614
        %v623 = vsub.f32 %v338, %v615
        %v624 = vmul.f32 %v620, 1.442695
        %v625 = vpow.pop %v624
        %v626 = vmul.f32 %v621, 1.442695
        %v627 = vpow.pop %v626
        %v628 = vmul.f32 %v622, 1.442695
        %v629 = vpow.pop %v628
        %v630 = vmul.f32 %v623, 1.442695
        %v631 = vpow.pop %v630
        %vm632 = vcmask 1040384
        %v633 = vsel %vm632, %v405, %v445
        %v634 = vsel %vm632, %v407, %v447
        %v635 = vsel %vm632, %v409, %v449
        %v636 = vsel %vm632, %v411, %v451
        %vm637 = vcmask 1041408
        %v638 = vsel %vm637, %v633, %v481
        %v639 = vsel %vm637, %v634, %v483
        %v640 = vsel %vm637, %v635, %v485
        %v641 = vsel %vm637, %v636, %v487
        %vm642 = vcmask 1042432
        %v643 = vsel %vm642, %v638, %v517
        %v644 = vsel %vm642, %v639, %v519
        %v645 = vsel %vm642, %v640, %v521
        %v646 = vsel %vm642, %v641, %v523
        %vm647 = vcmask 1043456
        %v648 = vsel %vm647, %v643, %v553
        %v649 = vsel %vm647, %v644, %v555
        %v650 = vsel %vm647, %v645, %v557
        %v651 = vsel %vm647, %v646, %v559
        %vm652 = vcmask 1044480
        %v653 = vsel %vm652, %v648, %v589
        %v654 = vsel %vm652, %v649, %v591
        %v655 = vsel %vm652, %v650, %v593
        %v656 = vsel %vm652, %v651, %v595
        %vm657 = vcmask 1045504
        %v658 = vsel %vm657, %v653, %v625
        %v659 = vsel %vm657, %v654, %v627
        %v660 = vsel %vm657, %v655, %v629
        %v661 = vsel %vm657, %v656, %v631
        %vm662 = vcmask 1046528
        %v663 = vsel %vm662, %v658, 0.0
        %v664 = vrot.slane %v663, 4
        %v665 = vadd.f32 %v663, %v664
        %v666 = vrot.slane %v665, 2
        %v667 = vadd.f32 %v665, %v666
        %v668 = vrot.slane %v667, 1
        %v669 = vadd.f32 %v667, %v668
        %v670 = vsel %vm662, %v659, 0.0
        %v671 = vrot.slane %v670, 4
        %v672 = vadd.f32 %v670, %v671
        %v673 = vrot.slane %v672, 2
        %v674 = vadd.f32 %v672, %v673
        %v675 = vrot.slane %v674, 1
        %v676 = vadd.f32 %v674, %v675
        %v677 = vsel %vm662, %v660, 0.0
        %v678 = vrot.slane %v677, 4
        %v679 = vadd.f32 %v677, %v678
        %v680 = vrot.slane %v679, 2
        %v681 = vadd.f32 %v679, %v680
        %v682 = vrot.slane %v681, 1
        %v683 = vadd.f32 %v681, %v682
        %v684 = vsel %vm662, %v661, 0.0
        %v685 = vrot.slane %v684, 4
        %v686 = vadd.f32 %v684, %v685
        %v687 = vrot.slane %v686, 2
        %v688 = vadd.f32 %v686, %v687
        %v689 = vrot.slane %v688, 1
        %v690 = vadd.f32 %v688, %v689
        %v691 = vadd.f32 %v658, 0.0001
        %v692 = vadd.f32 %v659, 0.0001
        %v693 = vadd.f32 %v660, 0.0001
        %v694 = vadd.f32 %v661, 0.0001
        %v695 = vsub.f32 1.0001, %v669
        %v696 = vsub.f32 1.0001, %v676
        %v697 = vsub.f32 1.0001, %v683
        %v698 = vsub.f32 1.0001, %v690
        %v699 = vsel %vm662, %v691, %v695
        %v700 = vsel %vm662, %v692, %v696
        %v701 = vsel %vm662, %v693, %v697
        %v702 = vsel %vm662, %v694, %v698
        %703 = vst [vmem:[%s174] sm:$0xff] %v699
        %704 = vst [vmem:[%s174 + $0x8] sm:$0xff] %v700
        %705 = vst [vmem:[%s174 + $0x10] sm:$0xff] %v701
        %706 = vst [vmem:[%s174 + $0x18] sm:$0xff] %v702
        %s707 = sand.u32 %s75, 1
        %s708 = scalar_lea.sflag [#allocation4], %s707
        %s709 = sand.u32 %s75, 1
        %s710 = smul.addr %s709, 32
        %s711 = scalar_lea.vmem [#allocation7], %s710
        // Predicated region
        $region37: #{tpu_custom_call.1} parent=27 // pred_check
          %p712 = pneg %p85
        $region38: #{tpu_custom_call.1} parent=27 // pred_check_branch
          %714 = sbr.rel (%p712) target = $region40
        $region39: #{tpu_custom_call.1} parent=27 // pred_region
          %s715 = smul.u32 4, %s20
          %s717 = ssub.s32 512, 512
          %718 = vsyncadd %s708, %s717
          %s719 = smul.addr %s715, 128
          %s720 = scalar_lea.hbm %s2, %s719
          %s722 = sshll.u32 %s711, 4
          %s723 = int_to_ptr.vmem [resolvable:$true] %s722
          %725 = dma.vmem_to_hbm [thread:$0]  %s723, 512, %s720, %s708
        $region40: #{tpu_custom_call.1} parent=27 // pred_fallthru
          _
      $region28: #{tpu_custom_call.1} parent=5 // pred_fallthru
        _
      %p726 = scmp.le.s32.totalorder 2, %s15
      // Predicated region
      $region41: #{tpu_custom_call.1} parent=5 // pred_check
        %p727 = pneg %p726
      $region42: #{tpu_custom_call.1} parent=5 // pred_check_branch
        %729 = sbr.rel (%p727) target = $region44
      $region43: #{tpu_custom_call.1} parent=5 // pred_region
        %s730 = ssub.s32 %s15, 2
        // Predicated region
        $region45: #{tpu_custom_call.1} parent=43 // pred_check
          %p731 = pneg %p91
        $region46: #{tpu_custom_call.1} parent=43 // pred_check_branch
          %733 = sbr.rel (%p731) target = $region48
        $region47: #{tpu_custom_call.1} parent=43 // pred_region
          %s734 = sand.u32 %s76, 1
          %s735 = scalar_lea.sflag [#allocation4], %s734
          %s736 = sand.u32 %s76, 1
          %s737 = smul.addr %s736, 32
          %s738 = scalar_lea.vmem [#allocation7], %s737
          %739 = dma.done %s735, 512
        $region48: #{tpu_custom_call.1} parent=43 // pred_fallthru
          _
      $region44: #{tpu_custom_call.1} parent=5 // pred_fallthru
        _
    $region6: #{tpu_custom_call.1} parent=1 // loop_footer
      %s19 = sadd.s32 1, %s15
    $region7: #{tpu_custom_call.1} parent=1 // loop_footer_branch
      %14 = sbr.rel target = $region3
    $region8: #{tpu_custom_call.1} parent=1 // loop_exit
      _
    %740 = vsyncpa [#allocation3], 1
    %s741 = scalar_lea.sflag [#allocation3], 1
    %742 = vsyncpa %s741, 1
    %743 = vsyncpa [#allocation6], 1
    %744 = vsyncpa [#allocation4], 1
    %s745 = scalar_lea.sflag [#allocation4], 1
    %746 = vsyncpa %s745, 1

</llo_original>
